<compile_context>
chip_gen: v7x
topology: tpu7x:2x2x1
jax: 0.10.0
libtpu: 0.0.40
codegen_flags: <defaults>
</compile_context>

<pallas_src>
import functools

import jax
import jax.numpy as jnp
from jax.experimental import pallas as pl
from jax.experimental.pallas import tpu as pltpu


def _round_up(x, m):
    return ((x + m - 1) // m) * m


# ----------------------------- Pallas kernel ------------------------------ #

def _convT_mm_relu_kernel(w_ref, x_ref, o_ref):
    # w_ref: (Coutp, Kp) bf16 -- bias folded into the last valid column
    # x_ref: (Kp, TN)    bf16 -- row K is all-ones and carries the bias
    # o_ref: (Coutp, TN) f32
    acc = jnp.dot(w_ref[...], x_ref[...], preferred_element_type=jnp.float32)
    o_ref[...] = jnp.maximum(acc, 0.0)


def _pick_lane_tile(m):
    """Lane-tile width along M. Chip-independent: keep tiles >= 512 lanes to
    amortize per-step overhead; cores share work via the grid count under
    "parallel" semantics, not by shrinking the tile width."""
    m_aligned = _round_up(m, 128)
    if m_aligned <= 512:
        return m_aligned
    if m_aligned >= 8 * 2048:
        return 2048
    if m_aligned >= 8 * 1024:
        return 1024
    return 512


def _matmul_relu_T(w_t, x_t):
    """w_t: (Coutp, Kp) bf16, x_t: (Kp, M) bf16 -> relu(w_t @ x_t) as (Coutp, M) f32."""
    coutp, kp = w_t.shape
    m = x_t.shape[1]

    tn = _pick_lane_tile(m)
    m_pad = _round_up(m, tn)
    if m_pad != m:
        x_t = jnp.pad(x_t, ((0, 0), (0, m_pad - m)))

    # VMEM use is tiny (~0.3 MiB with double buffering), so the default scoped
    # VMEM limit is fine on v5e/v6e/v7x; no vmem_limit_bytes needed.
    out = pl.pallas_call(
        _convT_mm_relu_kernel,
        out_shape=jax.ShapeDtypeStruct((coutp, m_pad), jnp.float32),
        grid=(m_pad // tn,),
        in_specs=[
            # Resident weight: block == full array, so Kp only needs the bf16
            # sublane multiple (16), not 128.
            pl.BlockSpec((coutp, kp), lambda i: (0, 0)),
            # Patch columns: sublane Kp % 8 == 0, lane tn % 128 == 0.
            pl.BlockSpec((kp, tn), lambda i: (0, i)),
        ],
        out_specs=pl.BlockSpec((coutp, tn), lambda i: (0, i)),
        compiler_params=pltpu.CompilerParams(
            dimension_semantics=("parallel",),
            # Allow XLA to fuse the (data-movement-only) im2col producer chain
            # of x_t into the pallas-call input, avoiding a separate HBM
            # round trip of the largest tensor.
            allow_input_fusion=[False, True],
        ),
        cost_estimate=pl.CostEstimate(
            flops=2 * coutp * kp * m_pad,
            transcendentals=0,
            bytes_accessed=2 * coutp * kp + 2 * kp * m_pad + 4 * coutp * m_pad,
        ),
    )(w_t, x_t)

    return out[:, :m]


# ------------------------------ JAX wrapper -------------------------------- #

def simple_backbone_forward(x_nchw, weight, bias, *, stride, padding):
    """Conv2d(stride, padding) + ReLU.

    x_nchw : (N, Cin, H, W)
    weight : (Cout, Cin, KH, KW)   -- PyTorch Conv2d layout
    bias   : (Cout,)
    returns: (N, Cout, OH, OW) float32
    """
    N, Cin, H, W = x_nchw.shape
    Cout, _, KH, KW = weight.shape

    OH = (H + 2 * padding - KH) // stride + 1
    OW = (W + 2 * padding - KW) // stride + 1
    M = N * OH * OW
    K = KH * KW * Cin
    Kb = K + 1                      # +1 all-ones row that carries the bias
    Kp = _round_up(Kb, 16)          # bf16 packs 16 sublanes/vreg -> 48 for K=36
    Coutp = _round_up(Cout, 8)      # sublane-aligned output rows

    # im2col directly in NCHW, in bf16: stack the KH*KW shifted views, bring
    # Cin next to the tap axis. The permute only swaps tiny leading axes over
    # contiguous OH*OW blocks; with allow_input_fusion this whole chain fuses
    # into the pallas input DMA instead of a materialized HBM intermediate.
    # TODO(synk): for production-scale backbones, build the im2col tiles
    # in-kernel with manual DMAs from an HBM-resident input instead of relying
    # on XLA input fusion.
    xp = jnp.pad(x_nchw.astype(jnp.bfloat16),
                 ((0, 0), (0, 0), (padding, padding), (padding, padding)))
    cols = []
    for kh in range(KH):
        for kw in range(KW):
            cols.append(xp[:, :, kh:kh + stride * OH:stride,
                               kw:kw + stride * OW:stride])      # (N, Cin, OH, OW)
    x_t = jnp.stack(cols, axis=0)                                # (KH*KW, N, Cin, OH, OW)
    x_t = jnp.transpose(x_t, (0, 2, 1, 3, 4))                    # (KH*KW, Cin, N, OH, OW)
    x_t = x_t.reshape(K, M)                                      # K order = [kh, kw, cin]
    x_t = jnp.concatenate([x_t, jnp.ones((1, M), jnp.bfloat16)], axis=0)   # bias row
    x_t = jnp.pad(x_t, ((0, Kp - Kb), (0, 0)))                   # zero rows are harmless

    # Weight (Cout,Cin,KH,KW) -> (Cout,KH,KW,Cin) -> (Cout,K) matching K order;
    # append the bias as the column that multiplies the all-ones row.
    w_t = jnp.transpose(weight.astype(jnp.bfloat16), (0, 2, 3, 1)).reshape(Cout, K)
    w_t = jnp.concatenate([w_t, bias.astype(jnp.bfloat16).reshape(Cout, 1)], axis=1)
    w_t = jnp.pad(w_t, ((0, Coutp - Cout), (0, Kp - Kb)))

    out_t = _matmul_relu_T(w_t, x_t)                             # (Coutp, M) f32, lane-dense
    out_t = out_t[:Cout].reshape(Cout, N, OH, OW)
    return jnp.transpose(out_t, (1, 0, 2, 3))                    # cheap axis-0/1 swap


# -------------------------------- reference -------------------------------- #

def _reference_forward(x_nchw, weight, bias, *, stride, padding):
    y = jax.lax.conv_general_dilated(
        x_nchw.astype(jnp.float32), weight.astype(jnp.float32),
        window_strides=(stride, stride),
        padding=[(padding, padding), (padding, padding)],
        dimension_numbers=("NCHW", "OIHW", "NCHW"))
    y = y + bias.reshape(1, -1, 1, 1)
    return jnp.maximum(y, 0.0)


# ---------------------------------- main ----------------------------------- #

if __name__ == "__main__":
    # simple_backbone(cl_input_channels=4, cl_num_filters=32,
    #                 cl_filter_size=3, cl_stride=1, cl_padding=1)
    N, Cin, H, W = 2, 4, 16, 16
    Cout, KH, KW = 32, 3, 3
    stride, padding = 1, 1

    key = jax.random.PRNGKey(0)
    kx, kw, kb = jax.random.split(key, 3)

    x = jax.random.normal(kx, (N, Cin, H, W), dtype=jnp.float32)
    fan_in = Cin * KH * KW
    weight = jax.random.normal(kw, (Cout, Cin, KH, KW), dtype=jnp.float32) / jnp.sqrt(fan_in)
    bias = jax.random.normal(kb, (Cout,), dtype=jnp.float32) * 0.1

    fwd = jax.jit(functools.partial(simple_backbone_forward,
                                    stride=stride, padding=padding))
    out = jax.block_until_ready(fwd(x, weight, bias))

    ref = _reference_forward(x, weight, bias, stride=stride, padding=padding)
    assert out.shape == (N, Cout, H, W), out.shape
    # bf16 operands (f32 accumulation) -> compare against the f32 reference
    # with a correspondingly looser tolerance (expected quantization).
    assert jnp.allclose(out, ref, atol=2e-2, rtol=2e-2), "mismatch vs reference conv"

    print("KERNEL_OK")
</pallas_src>

<mosaic_0001>
module attributes {stable_mosaic.version = 11 : i64} {
  func.func @_convT_mm_relu_kernel(%arg0: i32, %arg1: memref<32x48xbf16, #tpu.memory_space<vmem>>, %arg2: memref<48x512xbf16, #tpu.memory_space<vmem>>, %arg3: memref<32x512xf32, #tpu.memory_space<vmem>>) attributes {dimension_semantics = [#tpu.dimension_semantics<parallel>], iteration_bounds = array<i64: 1>, scalar_prefetch = 0 : i64, scratch_operands = 0 : i64, tpu.core_type = #tpu.core_type<tc>, window_params = [{pipeline_mode = #tpu.pipeline_mode<synchronous>, transform_indices = @transform_0, window_bounds = array<i64: 32, 48>}, {transform_indices = @transform_1, window_bounds = array<i64: 48, 512>}, {transform_indices = @transform_2, window_bounds = array<i64: 32, 512>}]} {
    %c0 = arith.constant 0 : index
    %c0_0 = arith.constant 0 : index
    %0 = vector.load %arg1[%c0, %c0_0] : memref<32x48xbf16, #tpu.memory_space<vmem>>, vector<32x48xbf16>
    %c0_1 = arith.constant 0 : index
    %c0_2 = arith.constant 0 : index
    %1 = vector.load %arg2[%c0_1, %c0_2] : memref<48x512xbf16, #tpu.memory_space<vmem>>, vector<48x512xbf16>
    %cst = arith.constant dense<0.000000e+00> : vector<32x512xf32>
    %2 = tpu.matmul %0, %1, %cst {dimension_numbers = #tpu.dot_dimension_numbers<[1], [0], [0], [1], [0, 0, 1, 1], [], []>} : vector<32x48xbf16>, vector<48x512xbf16>, vector<32x512xf32> -> vector<32x512xf32>
    %cst_3 = arith.constant 0.000000e+00 : f32
    %3 = vector.broadcast %cst_3 : f32 to vector<32x512xf32>
    %4 = arith.maximumf %2, %3 : vector<32x512xf32>
    %c0_4 = arith.constant 0 : index
    %c0_5 = arith.constant 0 : index
    %5 = vector.load %arg3[%c0_4, %c0_5] : memref<32x512xf32, #tpu.memory_space<vmem>>, vector<32x512xf32>
    tpu.vector_store %arg3[%c0_4, %c0_5], %4 {strides = array<i32>} : memref<32x512xf32, #tpu.memory_space<vmem>>, vector<32x512xf32>,
    return
  }
  func.func @transform_0(%arg0: i32) -> (i32, i32) {
    %c0_i32 = arith.constant 0 : i32
    %c0_i32_0 = arith.constant 0 : i32
    %c0_i32_1 = arith.constant 0 : i32
    return %c0_i32, %c0_i32_0 : i32, i32
  }
  func.func @transform_1(%arg0: i32) -> (i32, i32) {
    %c0_i32 = arith.constant 0 : i32
    %c0_i32_0 = arith.constant 0 : i32
    return %c0_i32, %arg0 : i32, i32
  }
  func.func @transform_2(%arg0: i32) -> (i32, i32) {
    %c0_i32 = arith.constant 0 : i32
    %c0_i32_0 = arith.constant 0 : i32
    return %c0_i32, %arg0 : i32, i32
  }
}

</mosaic_0001>

<llo_original>
// kernel: simple_backbone_forward.2
$region0: #{simple_backbone_forward.2}
  #allocation0 [shape = 'u32[]', space=smem, size = 0x4, offset = 0x4, fixed_abs, tag = 'smem constant byte address 0x4 - core index']
  #allocation1 [shape = 'u32[144,128]{1,0:T(1,128)}', space=vmem, size = 0x12000, scoped, tag = 'internal scratch']
  #allocation2 [shape = 'u32[2048]{0}', space=vmem, size = 0x2000, scoped, tag = 'scoped memory for simple_backbone_forward.2']
  #allocation3 [shape = 'u32[2048]{0}', space=vmem, size = 0x2000, scoped, tag = 'scoped memory for simple_backbone_forward.2']
  #allocation4 [shape = 'u32[2048]{0}', space=vmem, size = 0x2000, scoped, tag = 'scoped memory for simple_backbone_forward.2']
  #allocation5 [shape = 'u32[2048]{0}', space=vmem, size = 0x2000, scoped, tag = 'scoped memory for simple_backbone_forward.2']
  #allocation6 [shape = 'u32[2048]{0}', space=vmem, size = 0x2000, scoped, tag = 'scoped memory for simple_backbone_forward.2']
  %s0 = inlined_call_operand.vmem [shape: bf16[32,48], index: 0, kind: input, shape index: {}]
  %s1 = inlined_call_operand.<no memory space> [shape: s32[], index: 1, kind: input, shape index: {}]
  %s2 = inlined_call_operand.vmem [shape: bf16[36,512], index: 2, kind: input, shape index: {}]
  %s3 = inlined_call_operand.<no memory space> [shape: bf16[], index: 3, kind: input, shape index: {}]
  %s4 = inlined_call_operand.<no memory space> [shape: bf16[], index: 4, kind: input, shape index: {}]
  %s5 = inlined_call_operand.vmem [shape: f32[32,512], index: 5, kind: output, shape index: {}]
  %s6 = sld [smem:[#allocation0]]
  $region18: #{simple_backbone_forward.2} parent=0
    _
  %s8 = ssub.s32 1, %s6
  %s9 = scalar_select 0, %s8, %s6
  %v10 = vstv %s1
  %v11 = vstv %s3
  %v12 = vunpack.i.l.bf16 %v11
  %v14 = vunpack.i.h.bf16 %v11
  %v16 = vstv %s4
  %v17 = vunpack.i.l.bf16 %v16
  %v19 = vunpack.i.h.bf16 %v16
  $region1: #{simple_backbone_forward.2} parent=0
    #allocation7 [shape = 'u8[49152]{0}', space=vmem, size = 0xc000, dematerialized = true, scoped, tag = 'FusionAdapter Buffer %fusion.2 = bf16[48,512]{1,0:T(8,128)(2,1)} fusion(%param_1.60, %param_2.28, %param_3.36, %param_4.8), kind=kLoop, calls=%fused_computation.1.clone.clone, metadata={op_name="jit(simple_backbone_forward)/jit(_pad)/pad" stack_frame_id=15}']
    // Predicated region
    $region2: #{simple_backbone_forward.2} parent=1 // pred_check
      _
    $region3: #{simple_backbone_forward.2} parent=1 // pred_check_branch
      %22 = sbr.rel (0) target = $region5
    $region4: #{simple_backbone_forward.2} parent=1 // pred_region
      _
    $region5: #{simple_backbone_forward.2} parent=1 // pred_fallthru
      _
    // Predicated region
    $region6: #{simple_backbone_forward.2} parent=1 // pred_check
      _
    $region7: #{simple_backbone_forward.2} parent=1 // pred_check_branch
      %24 = sbr.rel (0) target = $region9
    $region8: #{simple_backbone_forward.2} parent=1 // pred_region
      _
    $region9: #{simple_backbone_forward.2} parent=1 // pred_fallthru
      _
    %v25 = vld [vmem:[%s2] sm:$0xf]
    %v26 = vunpack.c.l.bf16 %v25
    %v27 = vunpack.c.h.bf16 %v25
    %v28 = vlaneseq
    %v29 = vshrl.u32 %v28, 7
    %vm31 = vcmp.lt.s32.totalorder %v29, 36
    %v32 = vsel %vm31, %v26, %v12
    %v33 = vlaneseq
    %v34 = vshrl.u32 %v33, 7
    %37 = xla_tuple %v34, %v10
    %38 = xla_tuple %37
    %vm39 = vcmp.lt.s32.totalorder %v34, %v10
    %v40 = vsel %vm39, 1, 0
    %41 = xla_tuple %v40
    %42 = xla_tuple %v40, %v32, %v17
    %43 = xla_tuple %42
    %v44 = vsel %vm39, %v32, %v17
    %45 = xla_tuple %v44
    %v46 = vpack.c.bf16 0.0, %v44
    %48 = vst [vmem:[#allocation7] sm:$0xf] %v46
    %s49 = scalar_lea.vmem %s2, 4
    %v50 = vld [vmem:[%s49] sm:$0xf]
    %v51 = vunpack.c.l.bf16 %v50
    %v52 = vunpack.c.h.bf16 %v50
    %v53 = vlaneseq
    %v54 = vshrl.u32 %v53, 7
    %vm56 = vcmp.lt.s32.totalorder %v54, 36
    %v57 = vsel %vm56, %v51, %v12
    %v58 = vlaneseq
    %v59 = vshrl.u32 %v58, 7
    %62 = xla_tuple %v59, %v10
    %63 = xla_tuple %62
    %vm64 = vcmp.lt.s32.totalorder %v59, %v10
    %v65 = vsel %vm64, 1, 0
    %66 = xla_tuple %v65
    %67 = xla_tuple %v65, %v57, %v17
    %68 = xla_tuple %67
    %v69 = vsel %vm64, %v57, %v17
    %70 = xla_tuple %v69
    %s71 = scalar_lea.vmem [#allocation7], 4
    %v72 = vpack.c.bf16 0.0, %v69
    %74 = vst [vmem:[%s71] sm:$0xf] %v72
    %s75 = scalar_lea.vmem %s2, 8
    %v76 = vld [vmem:[%s75] sm:$0xf]
    %v77 = vunpack.c.l.bf16 %v76
    %v78 = vunpack.c.h.bf16 %v76
    %v79 = vlaneseq
    %v80 = vshrl.u32 %v79, 7
    %vm82 = vcmp.lt.s32.totalorder %v80, 36
    %v83 = vsel %vm82, %v77, %v12
    %v84 = vlaneseq
    %v85 = vshrl.u32 %v84, 7
    %88 = xla_tuple %v85, %v10
    %89 = xla_tuple %88
    %vm90 = vcmp.lt.s32.totalorder %v85, %v10
    %v91 = vsel %vm90, 1, 0
    %92 = xla_tuple %v91
    %93 = xla_tuple %v91, %v83, %v17
    %94 = xla_tuple %93
    %v95 = vsel %vm90, %v83, %v17
    %96 = xla_tuple %v95
    %s97 = scalar_lea.vmem [#allocation7], 8
    %v98 = vpack.c.bf16 0.0, %v95
    %100 = vst [vmem:[%s97] sm:$0xf] %v98
    %s101 = scalar_lea.vmem %s2, 12
    %v102 = vld [vmem:[%s101] sm:$0xf]
    %v103 = vunpack.c.l.bf16 %v102
    %v104 = vunpack.c.h.bf16 %v102
    %v105 = vlaneseq
    %v106 = vshrl.u32 %v105, 7
    %vm108 = vcmp.lt.s32.totalorder %v106, 36
    %v109 = vsel %vm108, %v103, %v12
    %v110 = vlaneseq
    %v111 = vshrl.u32 %v110, 7
    %114 = xla_tuple %v111, %v10
    %115 = xla_tuple %114
    %vm116 = vcmp.lt.s32.totalorder %v111, %v10
    %v117 = vsel %vm116, 1, 0
    %118 = xla_tuple %v117
    %119 = xla_tuple %v117, %v109, %v17
    %120 = xla_tuple %119
    %v121 = vsel %vm116, %v109, %v17
    %122 = xla_tuple %v121
    %s123 = scalar_lea.vmem [#allocation7], 12
    %v124 = vpack.c.bf16 0.0, %v121
    %126 = vst [vmem:[%s123] sm:$0xf] %v124
    %s127 = scalar_lea.vmem %s2, 16
    %v128 = vld [vmem:[%s127] sm:$0xf]
    %v129 = vunpack.c.l.bf16 %v128
    %v130 = vunpack.c.h.bf16 %v128
    %v131 = vlaneseq
    %v132 = vshrl.u32 %v131, 7
    %v133 = vadd.s32 %v132, 8
    %vm134 = vcmp.lt.s32.totalorder %v133, 36
    %v135 = vsel %vm134, %v129, %v12
    %v136 = vlaneseq
    %v137 = vshrl.u32 %v136, 7
    %v139 = vadd.s32 %v137, 8
    %140 = xla_tuple %v139, %v10
    %141 = xla_tuple %140
    %vm142 = vcmp.lt.s32.totalorder %v139, %v10
    %v143 = vsel %vm142, 1, 0
    %144 = xla_tuple %v143
    %145 = xla_tuple %v143, %v135, %v17
    %146 = xla_tuple %145
    %v147 = vsel %vm142, %v135, %v17
    %148 = xla_tuple %v147
    %s149 = scalar_lea.vmem [#allocation7], 16
    %v150 = vpack.c.bf16 0.0, %v147
    %152 = vst [vmem:[%s149] sm:$0xf] %v150
    %s153 = scalar_lea.vmem %s2, 20
    %v154 = vld [vmem:[%s153] sm:$0xf]
    %v155 = vunpack.c.l.bf16 %v154
    %v156 = vunpack.c.h.bf16 %v154
    %v157 = vlaneseq
    %v158 = vshrl.u32 %v157, 7
    %v159 = vadd.s32 %v158, 8
    %vm160 = vcmp.lt.s32.totalorder %v159, 36
    %v161 = vsel %vm160, %v155, %v12
    %v162 = vlaneseq
    %v163 = vshrl.u32 %v162, 7
    %v165 = vadd.s32 %v163, 8
    %166 = xla_tuple %v165, %v10
    %167 = xla_tuple %166
    %vm168 = vcmp.lt.s32.totalorder %v165, %v10
    %v169 = vsel %vm168, 1, 0
    %170 = xla_tuple %v169
    %171 = xla_tuple %v169, %v161, %v17
    %172 = xla_tuple %171
    %v173 = vsel %vm168, %v161, %v17
    %174 = xla_tuple %v173
    %s175 = scalar_lea.vmem [#allocation7], 20
    %v176 = vpack.c.bf16 0.0, %v173
    %178 = vst [vmem:[%s175] sm:$0xf] %v176
    %s179 = scalar_lea.vmem %s2, 24
    %v180 = vld [vmem:[%s179] sm:$0xf]
    %v181 = vunpack.c.l.bf16 %v180
    %v182 = vunpack.c.h.bf16 %v180
    %v183 = vlaneseq
    %v184 = vshrl.u32 %v183, 7
    %v185 = vadd.s32 %v184, 8
    %vm186 = vcmp.lt.s32.totalorder %v185, 36
    %v187 = vsel %vm186, %v181, %v12
    %v188 = vlaneseq
    %v189 = vshrl.u32 %v188, 7
    %v191 = vadd.s32 %v189, 8
    %192 = xla_tuple %v191, %v10
    %193 = xla_tuple %192
    %vm194 = vcmp.lt.s32.totalorder %v191, %v10
    %v195 = vsel %vm194, 1, 0
    %196 = xla_tuple %v195
    %197 = xla_tuple %v195, %v187, %v17
    %198 = xla_tuple %197
    %v199 = vsel %vm194, %v187, %v17
    %200 = xla_tuple %v199
    %s201 = scalar_lea.vmem [#allocation7], 24
    %v202 = vpack.c.bf16 0.0, %v199
    %204 = vst [vmem:[%s201] sm:$0xf] %v202
    %s205 = scalar_lea.vmem %s2, 28
    %v206 = vld [vmem:[%s205] sm:$0xf]
    %v207 = vunpack.c.l.bf16 %v206
    %v208 = vunpack.c.h.bf16 %v206
    %v209 = vlaneseq
    %v210 = vshrl.u32 %v209, 7
    %v211 = vadd.s32 %v210, 8
    %vm212 = vcmp.lt.s32.totalorder %v211, 36
    %v213 = vsel %vm212, %v207, %v12
    %v214 = vlaneseq
    %v215 = vshrl.u32 %v214, 7
    %v217 = vadd.s32 %v215, 8
    %218 = xla_tuple %v217, %v10
    %219 = xla_tuple %218
    %vm220 = vcmp.lt.s32.totalorder %v217, %v10
    %v221 = vsel %vm220, 1, 0
    %222 = xla_tuple %v221
    %223 = xla_tuple %v221, %v213, %v17
    %224 = xla_tuple %223
    %v225 = vsel %vm220, %v213, %v17
    %226 = xla_tuple %v225
    %s227 = scalar_lea.vmem [#allocation7], 28
    %v228 = vpack.c.bf16 0.0, %v225
    %230 = vst [vmem:[%s227] sm:$0xf] %v228
    %s231 = scalar_lea.vmem %s2, 32
    %v232 = vld [vmem:[%s231] sm:$0xf]
    %v233 = vunpack.c.l.bf16 %v232
    %v234 = vunpack.c.h.bf16 %v232
    %v235 = vlaneseq
    %v236 = vshrl.u32 %v235, 7
    %v237 = vadd.s32 %v236, 16
    %vm238 = vcmp.lt.s32.totalorder %v237, 36
    %v239 = vsel %vm238, %v233, %v12
    %v240 = vlaneseq
    %v241 = vshrl.u32 %v240, 7
    %v243 = vadd.s32 %v241, 16
    %244 = xla_tuple %v243, %v10
    %245 = xla_tuple %244
    %vm246 = vcmp.lt.s32.totalorder %v243, %v10
    %v247 = vsel %vm246, 1, 0
    %248 = xla_tuple %v247
    %249 = xla_tuple %v247, %v239, %v17
    %250 = xla_tuple %249
    %v251 = vsel %vm246, %v239, %v17
    %252 = xla_tuple %v251
    %s253 = scalar_lea.vmem [#allocation7], 32
    %v254 = vpack.c.bf16 0.0, %v251
    %256 = vst [vmem:[%s253] sm:$0xf] %v254
    %s257 = scalar_lea.vmem %s2, 36
    %v258 = vld [vmem:[%s257] sm:$0xf]
    %v259 = vunpack.c.l.bf16 %v258
    %v260 = vunpack.c.h.bf16 %v258
    %v261 = vlaneseq
    %v262 = vshrl.u32 %v261, 7
    %v263 = vadd.s32 %v262, 16
    %vm264 = vcmp.lt.s32.totalorder %v263, 36
    %v265 = vsel %vm264, %v259, %v12
    %v266 = vlaneseq
    %v267 = vshrl.u32 %v266, 7
    %v269 = vadd.s32 %v267, 16
    %270 = xla_tuple %v269, %v10
    %271 = xla_tuple %270
    %vm272 = vcmp.lt.s32.totalorder %v269, %v10
    %v273 = vsel %vm272, 1, 0
    %274 = xla_tuple %v273
    %275 = xla_tuple %v273, %v265, %v17
    %276 = xla_tuple %275
    %v277 = vsel %vm272, %v265, %v17
    %278 = xla_tuple %v277
    %s279 = scalar_lea.vmem [#allocation7], 36
    %v280 = vpack.c.bf16 0.0, %v277
    %282 = vst [vmem:[%s279] sm:$0xf] %v280
    %s283 = scalar_lea.vmem %s2, 40
    %v284 = vld [vmem:[%s283] sm:$0xf]
    %v285 = vunpack.c.l.bf16 %v284
    %v286 = vunpack.c.h.bf16 %v284
    %v287 = vlaneseq
    %v288 = vshrl.u32 %v287, 7
    %v289 = vadd.s32 %v288, 16
    %vm290 = vcmp.lt.s32.totalorder %v289, 36
    %v291 = vsel %vm290, %v285, %v12
    %v292 = vlaneseq
    %v293 = vshrl.u32 %v292, 7
    %v295 = vadd.s32 %v293, 16
    %296 = xla_tuple %v295, %v10
    %297 = xla_tuple %296
    %vm298 = vcmp.lt.s32.totalorder %v295, %v10
    %v299 = vsel %vm298, 1, 0
    %300 = xla_tuple %v299
    %301 = xla_tuple %v299, %v291, %v17
    %302 = xla_tuple %301
    %v303 = vsel %vm298, %v291, %v17
    %304 = xla_tuple %v303
    %s305 = scalar_lea.vmem [#allocation7], 40
    %v306 = vpack.c.bf16 0.0, %v303
    %308 = vst [vmem:[%s305] sm:$0xf] %v306
    %s309 = scalar_lea.vmem %s2, 44
    %v310 = vld [vmem:[%s309] sm:$0xf]
    %v311 = vunpack.c.l.bf16 %v310
    %v312 = vunpack.c.h.bf16 %v310
    %v313 = vlaneseq
    %v314 = vshrl.u32 %v313, 7
    %v315 = vadd.s32 %v314, 16
    %vm316 = vcmp.lt.s32.totalorder %v315, 36
    %v317 = vsel %vm316, %v311, %v12
    %v318 = vlaneseq
    %v319 = vshrl.u32 %v318, 7
    %v321 = vadd.s32 %v319, 16
    %322 = xla_tuple %v321, %v10
    %323 = xla_tuple %322
    %vm324 = vcmp.lt.s32.totalorder %v321, %v10
    %v325 = vsel %vm324, 1, 0
    %326 = xla_tuple %v325
    %327 = xla_tuple %v325, %v317, %v17
    %328 = xla_tuple %327
    %v329 = vsel %vm324, %v317, %v17
    %330 = xla_tuple %v329
    %s331 = scalar_lea.vmem [#allocation7], 44
    %v332 = vpack.c.bf16 0.0, %v329
    %334 = vst [vmem:[%s331] sm:$0xf] %v332
    %s335 = scalar_lea.vmem %s2, 48
    %s337 = sor.u32 255, 127
    %s338 = sand.u32 %s337, 85
    %s339 = sshrl.u32 %s338, 1
    %s340 = sor.u32 %s338, %s339
    %s341 = sand.u32 51, %s340
    %s342 = sshrl.u32 %s341, 2
    %s343 = sor.u32 %s341, %s342
    %s344 = sand.u32 15, %s343
    %v345 = vld [vmem:[%s335] sm:%s344]
    %v346 = vunpack.c.l.bf16 %v345
    %v347 = vunpack.c.h.bf16 %v345
    %v348 = vlaneseq
    %v349 = vshrl.u32 %v348, 7
    %v350 = vadd.s32 %v349, 24
    %vm351 = vcmp.lt.s32.totalorder %v350, 36
    %v352 = vsel %vm351, %v346, %v12
    %v353 = vlaneseq
    %v354 = vshrl.u32 %v353, 7
    %v356 = vadd.s32 %v354, 24
    %357 = xla_tuple %v356, %v10
    %358 = xla_tuple %357
    %vm359 = vcmp.lt.s32.totalorder %v356, %v10
    %v360 = vsel %vm359, 1, 0
    %361 = xla_tuple %v360
    %362 = xla_tuple %v360, %v352, %v17
    %363 = xla_tuple %362
    %v364 = vsel %vm359, %v352, %v17
    %365 = xla_tuple %v364
    %s366 = scalar_lea.vmem [#allocation7], 48
    %v367 = vpack.c.bf16 0.0, %v364
    %369 = vst [vmem:[%s366] sm:$0xf] %v367
    %s370 = scalar_lea.vmem %s2, 52
    %s372 = sor.u32 255, 127
    %s373 = sand.u32 %s372, 85
    %s374 = sshrl.u32 %s373, 1
    %s375 = sor.u32 %s373, %s374
    %s376 = sand.u32 51, %s375
    %s377 = sshrl.u32 %s376, 2
    %s378 = sor.u32 %s376, %s377
    %s379 = sand.u32 15, %s378
    %v380 = vld [vmem:[%s370] sm:%s379]
    %v381 = vunpack.c.l.bf16 %v380
    %v382 = vunpack.c.h.bf16 %v380
    %v383 = vlaneseq
    %v384 = vshrl.u32 %v383, 7
    %v385 = vadd.s32 %v384, 24
    %vm386 = vcmp.lt.s32.totalorder %v385, 36
    %v387 = vsel %vm386, %v381, %v12
    %v388 = vlaneseq
    %v389 = vshrl.u32 %v388, 7
    %v391 = vadd.s32 %v389, 24
    %392 = xla_tuple %v391, %v10
    %393 = xla_tuple %392
    %vm394 = vcmp.lt.s32.totalorder %v391, %v10
    %v395 = vsel %vm394, 1, 0
    %396 = xla_tuple %v395
    %397 = xla_tuple %v395, %v387, %v17
    %398 = xla_tuple %397
    %v399 = vsel %vm394, %v387, %v17
    %400 = xla_tuple %v399
    %s401 = scalar_lea.vmem [#allocation7], 52
    %v402 = vpack.c.bf16 0.0, %v399
    %404 = vst [vmem:[%s401] sm:$0xf] %v402
    %s405 = scalar_lea.vmem %s2, 56
    %s407 = sor.u32 255, 127
    %s408 = sand.u32 %s407, 85
    %s409 = sshrl.u32 %s408, 1
    %s410 = sor.u32 %s408, %s409
    %s411 = sand.u32 51, %s410
    %s412 = sshrl.u32 %s411, 2
    %s413 = sor.u32 %s411, %s412
    %s414 = sand.u32 15, %s413
    %v415 = vld [vmem:[%s405] sm:%s414]
    %v416 = vunpack.c.l.bf16 %v415
    %v417 = vunpack.c.h.bf16 %v415
    %v418 = vlaneseq
    %v419 = vshrl.u32 %v418, 7
    %v420 = vadd.s32 %v419, 24
    %vm421 = vcmp.lt.s32.totalorder %v420, 36
    %v422 = vsel %vm421, %v416, %v12
    %v423 = vlaneseq
    %v424 = vshrl.u32 %v423, 7
    %v426 = vadd.s32 %v424, 24
    %427 = xla_tuple %v426, %v10
    %428 = xla_tuple %427
    %vm429 = vcmp.lt.s32.totalorder %v426, %v10
    %v430 = vsel %vm429, 1, 0
    %431 = xla_tuple %v430
    %432 = xla_tuple %v430, %v422, %v17
    %433 = xla_tuple %432
    %v434 = vsel %vm429, %v422, %v17
    %435 = xla_tuple %v434
    %s436 = scalar_lea.vmem [#allocation7], 56
    %v437 = vpack.c.bf16 0.0, %v434
    %439 = vst [vmem:[%s436] sm:$0xf] %v437
    %s440 = scalar_lea.vmem %s2, 60
    %s442 = sor.u32 255, 127
    %s443 = sand.u32 %s442, 85
    %s444 = sshrl.u32 %s443, 1
    %s445 = sor.u32 %s443, %s444
    %s446 = sand.u32 51, %s445
    %s447 = sshrl.u32 %s446, 2
    %s448 = sor.u32 %s446, %s447
    %s449 = sand.u32 15, %s448
    %v450 = vld [vmem:[%s440] sm:%s449]
    %v451 = vunpack.c.l.bf16 %v450
    %v452 = vunpack.c.h.bf16 %v450
    %v453 = vlaneseq
    %v454 = vshrl.u32 %v453, 7
    %v455 = vadd.s32 %v454, 24
    %vm456 = vcmp.lt.s32.totalorder %v455, 36
    %v457 = vsel %vm456, %v451, %v12
    %v458 = vlaneseq
    %v459 = vshrl.u32 %v458, 7
    %v461 = vadd.s32 %v459, 24
    %462 = xla_tuple %v461, %v10
    %463 = xla_tuple %462
    %vm464 = vcmp.lt.s32.totalorder %v461, %v10
    %v465 = vsel %vm464, 1, 0
    %466 = xla_tuple %v465
    %467 = xla_tuple %v465, %v457, %v17
    %468 = xla_tuple %467
    %v469 = vsel %vm464, %v457, %v17
    %470 = xla_tuple %v469
    %s471 = scalar_lea.vmem [#allocation7], 60
    %v472 = vpack.c.bf16 0.0, %v469
    %474 = vst [vmem:[%s471] sm:$0xf] %v472
    %s475 = scalar_lea.vmem %s2, 64
    %s477 = sor.u32 255, 127
    %s478 = sand.u32 %s477, 85
    %s479 = sshrl.u32 %s478, 1
    %s480 = sor.u32 %s478, %s479
    %s481 = sand.u32 51, %s480
    %s482 = sshrl.u32 %s481, 2
    %s483 = sor.u32 %s481, %s482
    %s484 = sand.u32 15, %s483
    %v485 = vld [vmem:[%s475] sm:%s484]
    %v486 = vunpack.c.l.bf16 %v485
    %v487 = vunpack.c.h.bf16 %v485
    %v488 = vlaneseq
    %v489 = vshrl.u32 %v488, 7
    %v490 = vadd.s32 %v489, 32
    %vm491 = vcmp.lt.s32.totalorder %v490, 36
    %v492 = vsel %vm491, %v486, %v12
    %v493 = vlaneseq
    %v494 = vshrl.u32 %v493, 7
    %v496 = vadd.s32 %v494, 32
    %497 = xla_tuple %v496, %v10
    %498 = xla_tuple %497
    %vm499 = vcmp.lt.s32.totalorder %v496, %v10
    %v500 = vsel %vm499, 1, 0
    %501 = xla_tuple %v500
    %502 = xla_tuple %v500, %v492, %v17
    %503 = xla_tuple %502
    %v504 = vsel %vm499, %v492, %v17
    %505 = xla_tuple %v504
    %s506 = scalar_lea.vmem [#allocation7], 64
    %v507 = vpack.c.bf16 0.0, %v504
    %509 = vst [vmem:[%s506] sm:$0xf] %v507
    %s510 = scalar_lea.vmem %s2, 68
    %s512 = sor.u32 255, 127
    %s513 = sand.u32 %s512, 85
    %s514 = sshrl.u32 %s513, 1
    %s515 = sor.u32 %s513, %s514
    %s516 = sand.u32 51, %s515
    %s517 = sshrl.u32 %s516, 2
    %s518 = sor.u32 %s516, %s517
    %s519 = sand.u32 15, %s518
    %v520 = vld [vmem:[%s510] sm:%s519]
    %v521 = vunpack.c.l.bf16 %v520
    %v522 = vunpack.c.h.bf16 %v520
    %v523 = vlaneseq
    %v524 = vshrl.u32 %v523, 7
    %v525 = vadd.s32 %v524, 32
    %vm526 = vcmp.lt.s32.totalorder %v525, 36
    %v527 = vsel %vm526, %v521, %v12
    %v528 = vlaneseq
    %v529 = vshrl.u32 %v528, 7
    %v531 = vadd.s32 %v529, 32
    %532 = xla_tuple %v531, %v10
    %533 = xla_tuple %532
    %vm534 = vcmp.lt.s32.totalorder %v531, %v10
    %v535 = vsel %vm534, 1, 0
    %536 = xla_tuple %v535
    %537 = xla_tuple %v535, %v527, %v17
    %538 = xla_tuple %537
    %v539 = vsel %vm534, %v527, %v17
    %540 = xla_tuple %v539
    %s541 = scalar_lea.vmem [#allocation7], 68
    %v542 = vpack.c.bf16 0.0, %v539
    %544 = vst [vmem:[%s541] sm:$0xf] %v542
    %s545 = scalar_lea.vmem %s2, 72
    %s547 = sor.u32 255, 127
    %s548 = sand.u32 %s547, 85
    %s549 = sshrl.u32 %s548, 1
    %s550 = sor.u32 %s548, %s549
    %s551 = sand.u32 51, %s550
    %s552 = sshrl.u32 %s551, 2
    %s553 = sor.u32 %s551, %s552
    %s554 = sand.u32 15, %s553
    %v555 = vld [vmem:[%s545] sm:%s554]
    %v556 = vunpack.c.l.bf16 %v555
    %v557 = vunpack.c.h.bf16 %v555
    %v558 = vlaneseq
    %v559 = vshrl.u32 %v558, 7
    %v560 = vadd.s32 %v559, 32
    %vm561 = vcmp.lt.s32.totalorder %v560, 36
    %v562 = vsel %vm561, %v556, %v12
    %v563 = vlaneseq
    %v564 = vshrl.u32 %v563, 7
    %v566 = vadd.s32 %v564, 32
    %567 = xla_tuple %v566, %v10
    %568 = xla_tuple %567
    %vm569 = vcmp.lt.s32.totalorder %v566, %v10
    %v570 = vsel %vm569, 1, 0
    %571 = xla_tuple %v570
    %572 = xla_tuple %v570, %v562, %v17
    %573 = xla_tuple %572
    %v574 = vsel %vm569, %v562, %v17
    %575 = xla_tuple %v574
    %s576 = scalar_lea.vmem [#allocation7], 72
    %v577 = vpack.c.bf16 0.0, %v574
    %579 = vst [vmem:[%s576] sm:$0xf] %v577
    %s580 = scalar_lea.vmem %s2, 76
    %s582 = sor.u32 255, 127
    %s583 = sand.u32 %s582, 85
    %s584 = sshrl.u32 %s583, 1
    %s585 = sor.u32 %s583, %s584
    %s586 = sand.u32 51, %s585
    %s587 = sshrl.u32 %s586, 2
    %s588 = sor.u32 %s586, %s587
    %s589 = sand.u32 15, %s588
    %v590 = vld [vmem:[%s580] sm:%s589]
    %v591 = vunpack.c.l.bf16 %v590
    %v592 = vunpack.c.h.bf16 %v590
    %v593 = vlaneseq
    %v594 = vshrl.u32 %v593, 7
    %v595 = vadd.s32 %v594, 32
    %vm596 = vcmp.lt.s32.totalorder %v595, 36
    %v597 = vsel %vm596, %v591, %v12
    %v598 = vlaneseq
    %v599 = vshrl.u32 %v598, 7
    %v601 = vadd.s32 %v599, 32
    %602 = xla_tuple %v601, %v10
    %603 = xla_tuple %602
    %vm604 = vcmp.lt.s32.totalorder %v601, %v10
    %v605 = vsel %vm604, 1, 0
    %606 = xla_tuple %v605
    %607 = xla_tuple %v605, %v597, %v17
    %608 = xla_tuple %607
    %v609 = vsel %vm604, %v597, %v17
    %610 = xla_tuple %v609
    %s611 = scalar_lea.vmem [#allocation7], 76
    %v612 = vpack.c.bf16 0.0, %v609
    %614 = vst [vmem:[%s611] sm:$0xf] %v612
    %v615 = vlaneseq
    %v616 = vshrl.u32 %v615, 7
    %v618 = vadd.s32 %v616, 40
    %619 = xla_tuple %v618, %v10
    %620 = xla_tuple %619
    %vm621 = vcmp.lt.s32.totalorder %v618, %v10
    %v622 = vsel %vm621, 1, 0
    %623 = xla_tuple %v622
    %624 = xla_tuple %v622, %v12, %v17
    %625 = xla_tuple %624
    %v626 = vsel %vm621, %v12, %v17
    %627 = xla_tuple %v626
    %s628 = scalar_lea.vmem [#allocation7], 80
    %v629 = vpack.c.bf16 0.0, %v626
    %631 = vst [vmem:[%s628] sm:$0xf] %v629
    %v632 = vlaneseq
    %v633 = vshrl.u32 %v632, 7
    %v635 = vadd.s32 %v633, 40
    %636 = xla_tuple %v635, %v10
    %637 = xla_tuple %636
    %vm638 = vcmp.lt.s32.totalorder %v635, %v10
    %v639 = vsel %vm638, 1, 0
    %640 = xla_tuple %v639
    %641 = xla_tuple %v639, %v12, %v17
    %642 = xla_tuple %641
    %v643 = vsel %vm638, %v12, %v17
    %644 = xla_tuple %v643
    %s645 = scalar_lea.vmem [#allocation7], 84
    %v646 = vpack.c.bf16 0.0, %v643
    %648 = vst [vmem:[%s645] sm:$0xf] %v646
    %v649 = vlaneseq
    %v650 = vshrl.u32 %v649, 7
    %v652 = vadd.s32 %v650, 40
    %653 = xla_tuple %v652, %v10
    %654 = xla_tuple %653
    %vm655 = vcmp.lt.s32.totalorder %v652, %v10
    %v656 = vsel %vm655, 1, 0
    %657 = xla_tuple %v656
    %658 = xla_tuple %v656, %v12, %v17
    %659 = xla_tuple %658
    %v660 = vsel %vm655, %v12, %v17
    %661 = xla_tuple %v660
    %s662 = scalar_lea.vmem [#allocation7], 88
    %v663 = vpack.c.bf16 0.0, %v660
    %665 = vst [vmem:[%s662] sm:$0xf] %v663
    %v666 = vlaneseq
    %v667 = vshrl.u32 %v666, 7
    %v669 = vadd.s32 %v667, 40
    %670 = xla_tuple %v669, %v10
    %671 = xla_tuple %670
    %vm672 = vcmp.lt.s32.totalorder %v669, %v10
    %v673 = vsel %vm672, 1, 0
    %674 = xla_tuple %v673
    %675 = xla_tuple %v673, %v12, %v17
    %676 = xla_tuple %675
    %v677 = vsel %vm672, %v12, %v17
    %678 = xla_tuple %v677
    %s679 = scalar_lea.vmem [#allocation7], 92
    %v680 = vpack.c.bf16 0.0, %v677
    %682 = vst [vmem:[%s679] sm:$0xf] %v680
    %v684 = vld [vmem:[%s0] sm:$0xf]
    %v685 = vld [vmem:[%s0 + $0x4] sm:$0xf]
    %v686 = vld [vmem:[%s0 + $0x8] sm:$0xf]
    %v687 = vld [vmem:[%s0 + $0xc] sm:$0xf]
    %v688 = vld [vmem:[#allocation7] sm:$0xff]
    %v689 = vld [vmem:[#allocation7 + $0x8] sm:$0xff]
    %v690 = vld [vmem:[#allocation7 + $0x10] sm:$0xff]
    %v691 = vld [vmem:[#allocation7 + $0x18] sm:$0xff]
    %v692 = vld [vmem:[#allocation7 + $0x20] sm:$0xff]
    %v693 = vld [vmem:[#allocation7 + $0x28] sm:$0xff]
    %v694 = vld [vmem:[#allocation7 + $0x30] sm:$0xff]
    %v695 = vld [vmem:[#allocation7 + $0x38] sm:$0xff]
    %v696 = vld [vmem:[#allocation7 + $0x40] sm:$0xff]
    %v697 = vld [vmem:[#allocation7 + $0x48] sm:$0xff]
    %v698 = vld [vmem:[#allocation7 + $0x50] sm:$0xff]
    %v699 = vld [vmem:[#allocation7 + $0x58] sm:$0xff]
    %v704 = vunpack.c.l.b16 %v684
    %v705 = vunpack.c.l.b16 %v685
    %v706 = vunpack.c.l.b16 %v686
    %v707 = vunpack.c.l.b16 %v687
    %v708 = vpack.c.b16 %v705, %v704
    %v709 = vpack.c.b16 %v707, %v706
    %v722 = vunpack.c.l.b16 %v688
    %v723 = vunpack.c.h.b16 %v688
    %v724 = vunpack.c.l.b16 %v689
    %v725 = vunpack.c.h.b16 %v689
    %v726 = vunpack.c.l.b16 %v690
    %v727 = vunpack.c.h.b16 %v690
    %v728 = vunpack.c.l.b16 %v691
    %v729 = vunpack.c.h.b16 %v691
    %v730 = vunpack.c.l.b16 %v692
    %v731 = vunpack.c.h.b16 %v692
    %v732 = vunpack.c.l.b16 %v693
    %v733 = vunpack.c.h.b16 %v693
    %v734 = vunpack.c.l.b16 %v694
    %v735 = vunpack.c.h.b16 %v694
    %v736 = vunpack.c.l.b16 %v695
    %v737 = vunpack.c.h.b16 %v695
    %v738 = vunpack.c.l.b16 %v696
    %v739 = vunpack.c.h.b16 %v696
    %v740 = vunpack.c.l.b16 %v697
    %v741 = vunpack.c.h.b16 %v697
    %v742 = vunpack.c.l.b16 %v698
    %v743 = vunpack.c.h.b16 %v698
    %v744 = vunpack.c.l.b16 %v699
    %v745 = vunpack.c.h.b16 %v699
    %v746 = vpack.c.b16 %v726, %v722
    %v747 = vpack.c.b16 %v727, %v723
    %v748 = vpack.c.b16 %v728, %v724
    %v749 = vpack.c.b16 %v729, %v725
    %v750 = vpack.c.b16 %v734, %v730
    %v751 = vpack.c.b16 %v735, %v731
    %v752 = vpack.c.b16 %v736, %v732
    %v753 = vpack.c.b16 %v737, %v733
    %v754 = vpack.c.b16 %v742, %v738
    %v755 = vpack.c.b16 %v743, %v739
    %v756 = vpack.c.b16 %v744, %v740
    %v757 = vpack.c.b16 %v745, %v741
    %vm770 = vcmask 392192
    %v772 = vsel %vm770, %v708, 0
    %v775 = vsel %vm770, %v709, 0
    %777 = vmatprep.subr.bf16.mxu0 %v747
    %778 = vmatpush1.bf16.msra.mxu0 %v746
    %779 = vmatprep.subr.bf16.mxu0 %v751
    %780 = vmatpush1.bf16.msra.mxu0 %v750
    %781 = vmatprep.subr.bf16.mxu0 %v755
    %782 = vmatpush1.bf16.msra.mxu0 %v754
    %783 = vmatprep.subr.bf16.mxu0 0
    %784 = vmatpush1.bf16.msra.mxu0 0
    %785 = vmatprep.subr.bf16.mxu0 0
    %786 = vmatpush1.bf16.msra.mxu0 0
    %787 = vmatprep.subr.bf16.mxu0 0
    %788 = vmatpush1.bf16.msra.mxu0 0
    %789 = vmatprep.subr.bf16.mxu0 0
    %790 = vmatpush1.bf16.msra.mxu0 0
    %791 = vmatprep.subr.bf16.mxu0 0
    %792 = vmatpush1.bf16.msra.mxu0 0
    %793 = vmatprep.subr.bf16.mxu0 0
    %794 = vmatpush1.bf16.msra.mxu0 0
    %795 = vmatprep.subr.bf16.mxu0 0
    %796 = vmatpush1.bf16.msra.mxu0 0
    %797 = vmatprep.subr.bf16.mxu0 0
    %798 = vmatpush1.bf16.msra.mxu0 0
    %799 = vmatprep.subr.bf16.mxu0 0
    %800 = vmatpush1.bf16.msra.mxu0 0
    %801 = vmatprep.subr.bf16.mxu0 0
    %802 = vmatpush1.bf16.msra.mxu0 0
    %803 = vmatprep.subr.bf16.mxu0 0
    %804 = vmatpush1.bf16.msra.mxu0 0
    %805 = vmatprep.subr.bf16.mxu0 0
    %806 = vmatpush1.bf16.msra.mxu0 0
    %807 = vmatprep.subr.bf16.mxu0 0
    %808 = vmatpush1.bf16.msra.mxu0 0
    %809 = vmatprep.mubr.bf16.mxu0 0
    %810 = vmatmul.mubr.bf16.gmra.mrb[0].mxu0 %v772
    %v811 = vpop.f32.mrb[0].mxu0
    %v812 = vadd.f32 0.0, %v811
    %v813 = vpop.f32.mrb[0].mxu0
    %v814 = vadd.f32 0.0, %v813
    %v815 = vpop.f32.mrb[0].mxu0
    %v816 = vadd.f32 0.0, %v815
    %v817 = vpop.f32.mrb[0].mxu0
    %v818 = vadd.f32 0.0, %v817
    %819 = vmatprep.mubr.bf16.mxu0 0
    %820 = vmatmul.mubr.bf16.gmra.mrb[0].mxu0 %v775
    %v821 = vpop.f32.mrb[0].mxu0
    %v822 = vadd.f32 0.0, %v821
    %v823 = vpop.f32.mrb[0].mxu0
    %v824 = vadd.f32 0.0, %v823
    %v825 = vpop.f32.mrb[0].mxu0
    %v826 = vadd.f32 0.0, %v825
    %v827 = vpop.f32.mrb[0].mxu0
    %v828 = vadd.f32 0.0, %v827
    %829 = vdwg.mxu0
    %830 = vmatprep.subr.bf16.mxu0 %v749
    %831 = vmatpush1.bf16.msra.mxu0 %v748
    %832 = vmatprep.subr.bf16.mxu0 %v753
    %833 = vmatpush1.bf16.msra.mxu0 %v752
    %834 = vmatprep.subr.bf16.mxu0 %v757
    %835 = vmatpush1.bf16.msra.mxu0 %v756
    %836 = vmatprep.subr.bf16.mxu0 0
    %837 = vmatpush1.bf16.msra.mxu0 0
    %838 = vmatprep.subr.bf16.mxu0 0
    %839 = vmatpush1.bf16.msra.mxu0 0
    %840 = vmatprep.subr.bf16.mxu0 0
    %841 = vmatpush1.bf16.msra.mxu0 0
    %842 = vmatprep.subr.bf16.mxu0 0
    %843 = vmatpush1.bf16.msra.mxu0 0
    %844 = vmatprep.subr.bf16.mxu0 0
    %845 = vmatpush1.bf16.msra.mxu0 0
    %846 = vmatprep.subr.bf16.mxu0 0
    %847 = vmatpush1.bf16.msra.mxu0 0
    %848 = vmatprep.subr.bf16.mxu0 0
    %849 = vmatpush1.bf16.msra.mxu0 0
    %850 = vmatprep.subr.bf16.mxu0 0
    %851 = vmatpush1.bf16.msra.mxu0 0
    %852 = vmatprep.subr.bf16.mxu0 0
    %853 = vmatpush1.bf16.msra.mxu0 0
    %854 = vmatprep.subr.bf16.mxu0 0
    %855 = vmatpush1.bf16.msra.mxu0 0
    %856 = vmatprep.subr.bf16.mxu0 0
    %857 = vmatpush1.bf16.msra.mxu0 0
    %858 = vmatprep.subr.bf16.mxu0 0
    %859 = vmatpush1.bf16.msra.mxu0 0
    %860 = vmatprep.subr.bf16.mxu0 0
    %861 = vmatpush1.bf16.msra.mxu0 0
    %862 = vmatprep.mubr.bf16.mxu0 0
    %863 = vmatmul.mubr.bf16.gmra.mrb[0].mxu0 %v772
    %v864 = vpop.f32.mrb[0].mxu0
    %v865 = vadd.f32 0.0, %v864
    %v866 = vpop.f32.mrb[0].mxu0
    %v867 = vadd.f32 0.0, %v866
    %v868 = vpop.f32.mrb[0].mxu0
    %v869 = vadd.f32 0.0, %v868
    %v870 = vpop.f32.mrb[0].mxu0
    %v871 = vadd.f32 0.0, %v870
    %872 = vmatprep.mubr.bf16.mxu0 0
    %873 = vmatmul.mubr.bf16.gmra.mrb[0].mxu0 %v775
    %v874 = vpop.f32.mrb[0].mxu0
    %v875 = vadd.f32 0.0, %v874
    %v876 = vpop.f32.mrb[0].mxu0
    %v877 = vadd.f32 0.0, %v876
    %v878 = vpop.f32.mrb[0].mxu0
    %v879 = vadd.f32 0.0, %v878
    %v880 = vpop.f32.mrb[0].mxu0
    %v881 = vadd.f32 0.0, %v880
    %882 = vdwg.mxu0
    %v883 = vmax.f32 %v812, 0.0
    %v884 = vmax.f32 %v814, 0.0
    %v885 = vmax.f32 %v865, 0.0
    %v886 = vmax.f32 %v867, 0.0
    %v887 = vmax.f32 %v816, 0.0
    %v888 = vmax.f32 %v818, 0.0
    %v889 = vmax.f32 %v869, 0.0
    %v890 = vmax.f32 %v871, 0.0
    %v891 = vmax.f32 %v822, 0.0
    %v892 = vmax.f32 %v824, 0.0
    %v893 = vmax.f32 %v875, 0.0
    %v894 = vmax.f32 %v877, 0.0
    %v895 = vmax.f32 %v826, 0.0
    %v896 = vmax.f32 %v828, 0.0
    %v897 = vmax.f32 %v879, 0.0
    %v898 = vmax.f32 %v881, 0.0
    %899 = vst [vmem:[%s5] sm:$0xff] %v883
    %900 = vst [vmem:[%s5 + $0x8] sm:$0xff] %v884
    %901 = vst [vmem:[%s5 + $0x10] sm:$0xff] %v885
    %902 = vst [vmem:[%s5 + $0x18] sm:$0xff] %v886
    %903 = vst [vmem:[%s5 + $0x20] sm:$0xff] %v887
    %904 = vst [vmem:[%s5 + $0x28] sm:$0xff] %v888
    %905 = vst [vmem:[%s5 + $0x30] sm:$0xff] %v889
    %906 = vst [vmem:[%s5 + $0x38] sm:$0xff] %v890
    %907 = vst [vmem:[%s5 + $0x40] sm:$0xff] %v891
    %908 = vst [vmem:[%s5 + $0x48] sm:$0xff] %v892
    %909 = vst [vmem:[%s5 + $0x50] sm:$0xff] %v893
    %910 = vst [vmem:[%s5 + $0x58] sm:$0xff] %v894
    %911 = vst [vmem:[%s5 + $0x60] sm:$0xff] %v895
    %912 = vst [vmem:[%s5 + $0x68] sm:$0xff] %v896
    %913 = vst [vmem:[%s5 + $0x70] sm:$0xff] %v897
    %914 = vst [vmem:[%s5 + $0x78] sm:$0xff] %v898
    // Predicated region
    $region10: #{simple_backbone_forward.2} parent=1 // pred_check
      _
    $region11: #{simple_backbone_forward.2} parent=1 // pred_check_branch
      %916 = sbr.rel (0) target = $region13
    $region12: #{simple_backbone_forward.2} parent=1 // pred_region
      _
    $region13: #{simple_backbone_forward.2} parent=1 // pred_fallthru
      _
    // Predicated region
    $region14: #{simple_backbone_forward.2} parent=1 // pred_check
      _
    $region15: #{simple_backbone_forward.2} parent=1 // pred_check_branch
      %918 = sbr.rel (0) target = $region17
    $region16: #{simple_backbone_forward.2} parent=1 // pred_region
      _
    $region17: #{simple_backbone_forward.2} parent=1 // pred_fallthru
      _

</llo_original>
